<compile_context>
chip_gen: v5e
topology: v5e:2x2
jax: 0.10.0
libtpu: 0.0.40
codegen_flags: <defaults>
</compile_context>

<pallas_src>
import functools

import jax
import jax.numpy as jnp
from jax import lax
from jax.experimental import pallas as pl
from jax.experimental.pallas import tpu as pltpu

_LANES = 128

_PAR = getattr(pltpu, "PARALLEL", "parallel")
_ARB = getattr(pltpu, "ARBITRARY", "arbitrary")
_CORE_PAR = getattr(pltpu, "CORE_PARALLEL", _PAR)


def _cdiv(a, b):
    return -(-a // b)


def _round_up(a, b):
    return _cdiv(a, b) * b


class _ChipConfig:
    def __init__(self, tile_m, vmem_bytes, cores, use_core_parallel):
        self.tile_m = tile_m
        self.vmem_bytes = vmem_bytes
        self.cores = cores
        self.use_core_parallel = use_core_parallel


def _chip_config():
    kind = ""
    try:
        dev = jax.devices()[0]
        if dev.platform == "tpu":
            kind = dev.device_kind.lower()
    except Exception:
        pass
    if "v7" in kind:
        # 2 TensorCores / 64 MiB VMEM per TC: bigger tiles + a real core split.
        return _ChipConfig(1024, 48 * 1024 * 1024, cores=2, use_core_parallel=True)
    if "v6" in kind:
        return _ChipConfig(1024, 64 * 1024 * 1024, cores=1, use_core_parallel=False)
    if "v5p" in kind or "v4" in kind:
        # Megacore: a "parallel" outer axis is sharded across the two TCs.
        return _ChipConfig(512, 32 * 1024 * 1024, cores=2, use_core_parallel=False)
    # v5e / unknown: single TC, most bandwidth-starved -> conservative.
    return _ChipConfig(512, 32 * 1024 * 1024, cores=1, use_core_parallel=False)


def _giou_kernel(scalars_ref, x_ref, out_ref, *, has_weight):
    # Grid: (core split, row tiles "arbitrary").  The output block index is
    # constant along the inner axis -> resident lane-dense accumulator.
    c = pl.program_id(0)
    i = pl.program_id(1)

    @pl.when(i == 0)
    def _():
        out_ref[...] = jnp.zeros_like(out_ref)

    # Component planes, each (tile_m, 128) f32, one box per lane.
    p_dx, p_dy, p_dw, p_dh = x_ref[0], x_ref[1], x_ref[2], x_ref[3]
    t_dx, t_dy, t_dw, t_dh = x_ref[4], x_ref[5], x_ref[6], x_ref[7]
    a_cx, a_cy, a_w, a_h = x_ref[8], x_ref[9], x_ref[10], x_ref[11]

    # box_coder.decode: delta xywh decode (appended angle column is 0, unused).
    p_cx = p_dx * a_w + a_cx
    p_cy = p_dy * a_h + a_cy
    p_w = a_w * jnp.exp(p_dw)
    p_h = a_h * jnp.exp(p_dh)
    g_cx = t_dx * a_w + a_cx
    g_cy = t_dy * a_h + a_cy
    g_w = a_w * jnp.exp(t_dw)
    g_h = a_h * jnp.exp(t_dh)

    p_x1 = p_cx - 0.5 * p_w
    p_y1 = p_cy - 0.5 * p_h
    p_x2 = p_cx + 0.5 * p_w
    p_y2 = p_cy + 0.5 * p_h
    g_x1 = g_cx - 0.5 * g_w
    g_y1 = g_cy - 0.5 * g_h
    g_x2 = g_cx + 0.5 * g_w
    g_y2 = g_cy + 0.5 * g_h
    p_area = p_w * p_h
    g_area = g_w * g_h

    xi1 = jnp.maximum(p_x1, g_x1)
    yi1 = jnp.maximum(p_y1, g_y1)
    xi2 = jnp.minimum(p_x2, g_x2)
    yi2 = jnp.minimum(p_y2, g_y2)
    inter = jnp.where((yi2 > yi1) & (xi2 > xi1), (xi2 - xi1) * (yi2 - yi1), 0.0)

    xe1 = jnp.minimum(p_x1, g_x1)
    ye1 = jnp.minimum(p_y1, g_y1)
    xe2 = jnp.maximum(p_x2, g_x2)
    ye2 = jnp.maximum(p_y2, g_y2)
    enclose = (xe2 - xe1) * (ye2 - ye1) + 1e-7

    union = p_area + g_area - inter + 1e-7
    iou = inter / union
    giou = iou - (enclose - union) / enclose
    loss = 1.0 - giou

    # In-kernel validity mask: global box index vs N (N prefetched to SMEM).
    # Free VALU filler under the DMA; makes padded lanes contribute exactly 0
    # without needing a zero-padded weight plane.
    tm = loss.shape[0]
    row = lax.broadcasted_iota(jnp.int32, (tm, _LANES), 0)
    lane = lax.broadcasted_iota(jnp.int32, (tm, _LANES), 1)
    gidx = ((c * pl.num_programs(1) + i) * tm + row) * _LANES + lane
    valid = gidx < scalars_ref[0]

    if has_weight:
        # weight.sum() > 0 ? weighted sum : plain sum  (flag prefetched).
        w = jnp.where(scalars_ref[1] > 0, x_ref[12], 1.0)
        contrib = loss * w
    else:
        contrib = loss

    # Elementwise lane-dense accumulation (no per-step cross-lane reduce, no
    # masked scalar store).
    out_ref[...] += jnp.where(valid, contrib, 0.0)[None, :, :]


@functools.partial(
    jax.jit,
    static_argnames=("tm", "n_split", "inner", "outer_sem", "vmem_bytes"))
def _giou_impl(pred, target, anchor, weight, *, tm, n_split, inner,
               outer_sem, vmem_bytes):
    N = pred.shape[0]
    has_weight = weight is not None
    M = n_split * inner * tm
    n_pad = M * _LANES

    # Single-pass repack into a lane/sublane-dense (C, M, 128) slab, fused by
    # XLA under jit.  C = 12 (no weight) or 13 (with weight plane).
    cols = [pred, target, anchor]
    if has_weight:
        cols.append(weight.reshape(N, 1))
    cat = jnp.concatenate(cols, axis=1)                       # (N, C)
    num_planes = cat.shape[1]
    planes = jnp.pad(cat, ((0, n_pad - N), (0, 0))).T.reshape(
        num_planes, M, _LANES)

    if has_weight:
        flag = (jnp.sum(weight) > 0).astype(jnp.int32)
    else:
        flag = jnp.int32(0)
    scalars = jnp.stack([jnp.int32(N), flag])                 # SMEM prefetch

    kernel = functools.partial(_giou_kernel, has_weight=has_weight)
    out = pl.pallas_call(
        kernel,
        out_shape=jax.ShapeDtypeStruct((n_split, tm, _LANES), jnp.float32),
        grid_spec=pltpu.PrefetchScalarGridSpec(
            num_scalar_prefetch=1,
            grid=(n_split, inner),
            in_specs=[
                pl.BlockSpec((num_planes, tm, _LANES),
                             lambda c, i, s: (0, c * inner + i, 0)),
            ],
            out_specs=pl.BlockSpec((1, tm, _LANES), lambda c, i, s: (c, 0, 0)),
        ),
        compiler_params=pltpu.CompilerParams(
            dimension_semantics=(outer_sem, _ARB),
            vmem_limit_bytes=vmem_bytes,
        ),
    )(scalars, planes)

    # Tiny epilogue reduction over the dense partial-sum slab.
    return jnp.sum(out)


def giou_loss(pred, target, anchor, weight=None, *, tile_m=None, n_split=None):
    pred = jnp.asarray(pred, jnp.float32).reshape(-1, 4)
    target = jnp.asarray(target, jnp.float32).reshape(-1, 4)
    N = pred.shape[0]
    assert N > 0, "losses.numel() != 0 (mirrors the PyTorch assert)"
    anchor = jnp.asarray(anchor, jnp.float32).reshape(N, -1)[:, :4]
    if weight is not None:
        weight = jnp.asarray(weight, jnp.float32).reshape(-1)

    cfg = _chip_config()
    if n_split is None:
        n_split = cfg.cores
    if tile_m is None:
        tile_m = cfg.tile_m
    tile_m = max(8, _round_up(tile_m, 8))

    rows = _cdiv(N, _LANES)                                   # 128-lane rows
    tm = max(8, min(tile_m, _round_up(_cdiv(rows, n_split), 8)))
    inner = _cdiv(rows, n_split * tm)

    outer_sem = _ARB
    if n_split > 1:
        outer_sem = (_CORE_PAR
                     if (cfg.use_core_parallel and n_split == cfg.cores)
                     else _PAR)

    return _giou_impl(pred, target, anchor, weight,
                      tm=tm, n_split=n_split, inner=inner,
                      outer_sem=outer_sem, vmem_bytes=cfg.vmem_bytes)


# ----------------------------- pure-JAX reference ----------------------------
def _decode_ref(deltas, anchors):
    a_cx, a_cy, a_w, a_h = anchors[:, 0], anchors[:, 1], anchors[:, 2], anchors[:, 3]
    dx, dy, dw, dh = deltas[:, 0], deltas[:, 1], deltas[:, 2], deltas[:, 3]
    return dx * a_w + a_cx, dy * a_h + a_cy, a_w * jnp.exp(dw), a_h * jnp.exp(dh)


def _reference(pred, target, anchor, weight):
    pred = jnp.asarray(pred, jnp.float32).reshape(-1, 4)
    target = jnp.asarray(target, jnp.float32).reshape(-1, 4)
    anchor = jnp.asarray(anchor, jnp.float32).reshape(pred.shape[0], -1)[:, :4]
    p_cx, p_cy, p_w, p_h = _decode_ref(pred, anchor)
    g_cx, g_cy, g_w, g_h = _decode_ref(target, anchor)
    p_x1, p_y1, p_x2, p_y2 = p_cx - p_w / 2, p_cy - p_h / 2, p_cx + p_w / 2, p_cy + p_h / 2
    g_x1, g_y1, g_x2, g_y2 = g_cx - g_w / 2, g_cy - g_h / 2, g_cx + g_w / 2, g_cy + g_h / 2
    p_area, g_area = p_w * p_h, g_w * g_h
    xi1, yi1 = jnp.maximum(p_x1, g_x1), jnp.maximum(p_y1, g_y1)
    xi2, yi2 = jnp.minimum(p_x2, g_x2), jnp.minimum(p_y2, g_y2)
    inter = jnp.where((yi2 > yi1) & (xi2 > xi1), (xi2 - xi1) * (yi2 - yi1), 0.0)
    xe1, ye1 = jnp.minimum(p_x1, g_x1), jnp.minimum(p_y1, g_y1)
    xe2, ye2 = jnp.maximum(p_x2, g_x2), jnp.maximum(p_y2, g_y2)
    enclose = (xe2 - xe1) * (ye2 - ye1) + 1e-7
    union = p_area + g_area - inter + 1e-7
    losses = 1.0 - (inter / union - (enclose - union) / enclose)
    if weight is not None:
        weight = jnp.asarray(weight, jnp.float32).reshape(-1)
        return jnp.where(jnp.sum(weight) > 0,
                         jnp.sum(losses * weight), jnp.sum(losses))
    return jnp.sum(losses)


if __name__ == "__main__":
    key = jax.random.PRNGKey(0)

    def make_inputs(n, k):
        k1, k2, k3, k4, k5 = jax.random.split(k, 5)
        pred = 0.2 * jax.random.normal(k1, (n, 4), dtype=jnp.float32)      # deltas
        target = 0.2 * jax.random.normal(k2, (n, 4), dtype=jnp.float32)    # encoded gt
        cxcy = 100.0 * jax.random.uniform(k3, (n, 2), dtype=jnp.float32)
        wh = 5.0 + 45.0 * jax.random.uniform(k4, (n, 2), dtype=jnp.float32)
        anchor = jnp.concatenate([cxcy, wh, jnp.zeros((n, 1), jnp.float32)],
                                 axis=-1)                                   # (n,5) xywha
        weight = jax.random.uniform(k5, (n,), dtype=jnp.float32)
        return pred, target, anchor, weight

    kk1, kk2, kk3 = jax.random.split(key, 3)

    # 1) small positive-sample batch with mixup-style weights (typical call).
    pred, target, anchor, weight = make_inputs(64, kk1)
    out = jax.block_until_ready(giou_loss(pred, target, anchor, weight))
    ref = _reference(pred, target, anchor, weight)
    assert bool(jnp.isfinite(out)), out
    assert jnp.allclose(out, ref, rtol=5e-4, atol=1e-2), (out, ref)

    # 2) weight=None (12-plane slab); forced tiny tile so the multi-step
    #    accumulation and padded-lane masking paths are exercised.
    pred, target, anchor, _ = make_inputs(2000, kk2)
    out = jax.block_until_ready(
        giou_loss(pred, target, anchor, None, tile_m=8, n_split=1))
    ref = _reference(pred, target, anchor, None)
    assert bool(jnp.isfinite(out)), out
    assert jnp.allclose(out, ref, rtol=5e-4, atol=1e-2), (out, ref)

    # 3) weight given but all-zero -> falls back to the unweighted sum branch.
    pred, target, anchor, _ = make_inputs(100, kk3)
    zero_w = jnp.zeros((100,), jnp.float32)
    out = jax.block_until_ready(giou_loss(pred, target, anchor, zero_w))
    ref = _reference(pred, target, anchor, zero_w)
    assert bool(jnp.isfinite(out)), out
    assert jnp.allclose(out, ref, rtol=5e-4, atol=1e-2), (out, ref)

    print("KERNEL_OK")
</pallas_src>

<mosaic_0001>
module attributes {stable_mosaic.version = 11 : i64} {
  func.func @_giou_kernel(%arg0: i32, %arg1: i32, %arg2: memref<2xi32, #tpu.memory_space<smem>>, %arg3: memref<13x8x128xf32, #tpu.memory_space<vmem>>, %arg4: memref<1x8x128xf32, #tpu.memory_space<vmem>>) attributes {dimension_semantics = [#tpu.dimension_semantics<arbitrary>, #tpu.dimension_semantics<arbitrary>], iteration_bounds = array<i64: 1, 1>, scalar_prefetch = 1 : i64, scratch_operands = 0 : i64, tpu.core_type = #tpu.core_type<tc>, window_params = [{transform_indices = @transform_0, window_bounds = array<i64: 13, 8, 128>}, {transform_indices = @transform_1, window_bounds = array<i64: 1, 8, 128>}]} {
    %c0_i32 = arith.constant 0 : i32
    %0 = arith.cmpi eq, %arg1, %c0_i32 : i32
    %1 = arith.extui %0 : i1 to i32
    %c0_i32_0 = arith.constant 0 : i32
    %2 = arith.cmpi ne, %1, %c0_i32_0 : i32
    scf.if %2 {
      %cst_49 = arith.constant 0.000000e+00 : f32
      %126 = vector.broadcast %cst_49 : f32 to vector<1x8x128xf32>
      %c0_50 = arith.constant 0 : index
      %c0_51 = arith.constant 0 : index
      %c0_52 = arith.constant 0 : index
      %127 = vector.load %arg4[%c0_50, %c0_51, %c0_52] : memref<1x8x128xf32, #tpu.memory_space<vmem>>, vector<1x8x128xf32>
      tpu.vector_store %arg4[%c0_50, %c0_51, %c0_52], %126 {strides = array<i32>} : memref<1x8x128xf32, #tpu.memory_space<vmem>>, vector<1x8x128xf32>,
    } else {
    }
    %c0 = arith.constant 0 : index
    %c0_1 = arith.constant 0 : index
    %c0_2 = arith.constant 0 : index
    %3 = vector.load %arg3[%c0, %c0_1, %c0_2] : memref<13x8x128xf32, #tpu.memory_space<vmem>>, vector<1x8x128xf32>
    %4 = vector.shape_cast %3 : vector<1x8x128xf32> to vector<8x128xf32>
    %c1 = arith.constant 1 : index
    %c0_3 = arith.constant 0 : index
    %c0_4 = arith.constant 0 : index
    %5 = vector.load %arg3[%c1, %c0_3, %c0_4] : memref<13x8x128xf32, #tpu.memory_space<vmem>>, vector<1x8x128xf32>
    %6 = vector.shape_cast %5 : vector<1x8x128xf32> to vector<8x128xf32>
    %c2 = arith.constant 2 : index
    %c0_5 = arith.constant 0 : index
    %c0_6 = arith.constant 0 : index
    %7 = vector.load %arg3[%c2, %c0_5, %c0_6] : memref<13x8x128xf32, #tpu.memory_space<vmem>>, vector<1x8x128xf32>
    %8 = vector.shape_cast %7 : vector<1x8x128xf32> to vector<8x128xf32>
    %c3 = arith.constant 3 : index
    %c0_7 = arith.constant 0 : index
    %c0_8 = arith.constant 0 : index
    %9 = vector.load %arg3[%c3, %c0_7, %c0_8] : memref<13x8x128xf32, #tpu.memory_space<vmem>>, vector<1x8x128xf32>
    %10 = vector.shape_cast %9 : vector<1x8x128xf32> to vector<8x128xf32>
    %c4 = arith.constant 4 : index
    %c0_9 = arith.constant 0 : index
    %c0_10 = arith.constant 0 : index
    %11 = vector.load %arg3[%c4, %c0_9, %c0_10] : memref<13x8x128xf32, #tpu.memory_space<vmem>>, vector<1x8x128xf32>
    %12 = vector.shape_cast %11 : vector<1x8x128xf32> to vector<8x128xf32>
    %c5 = arith.constant 5 : index
    %c0_11 = arith.constant 0 : index
    %c0_12 = arith.constant 0 : index
    %13 = vector.load %arg3[%c5, %c0_11, %c0_12] : memref<13x8x128xf32, #tpu.memory_space<vmem>>, vector<1x8x128xf32>
    %14 = vector.shape_cast %13 : vector<1x8x128xf32> to vector<8x128xf32>
    %c6 = arith.constant 6 : index
    %c0_13 = arith.constant 0 : index
    %c0_14 = arith.constant 0 : index
    %15 = vector.load %arg3[%c6, %c0_13, %c0_14] : memref<13x8x128xf32, #tpu.memory_space<vmem>>, vector<1x8x128xf32>
    %16 = vector.shape_cast %15 : vector<1x8x128xf32> to vector<8x128xf32>
    %c7 = arith.constant 7 : index
    %c0_15 = arith.constant 0 : index
    %c0_16 = arith.constant 0 : index
    %17 = vector.load %arg3[%c7, %c0_15, %c0_16] : memref<13x8x128xf32, #tpu.memory_space<vmem>>, vector<1x8x128xf32>
    %18 = vector.shape_cast %17 : vector<1x8x128xf32> to vector<8x128xf32>
    %c8 = arith.constant 8 : index
    %c0_17 = arith.constant 0 : index
    %c0_18 = arith.constant 0 : index
    %19 = vector.load %arg3[%c8, %c0_17, %c0_18] : memref<13x8x128xf32, #tpu.memory_space<vmem>>, vector<1x8x128xf32>
    %20 = vector.shape_cast %19 : vector<1x8x128xf32> to vector<8x128xf32>
    %c9 = arith.constant 9 : index
    %c0_19 = arith.constant 0 : index
    %c0_20 = arith.constant 0 : index
    %21 = vector.load %arg3[%c9, %c0_19, %c0_20] : memref<13x8x128xf32, #tpu.memory_space<vmem>>, vector<1x8x128xf32>
    %22 = vector.shape_cast %21 : vector<1x8x128xf32> to vector<8x128xf32>
    %c10 = arith.constant 10 : index
    %c0_21 = arith.constant 0 : index
    %c0_22 = arith.constant 0 : index
    %23 = vector.load %arg3[%c10, %c0_21, %c0_22] : memref<13x8x128xf32, #tpu.memory_space<vmem>>, vector<1x8x128xf32>
    %24 = vector.shape_cast %23 : vector<1x8x128xf32> to vector<8x128xf32>
    %c11 = arith.constant 11 : index
    %c0_23 = arith.constant 0 : index
    %c0_24 = arith.constant 0 : index
    %25 = vector.load %arg3[%c11, %c0_23, %c0_24] : memref<13x8x128xf32, #tpu.memory_space<vmem>>, vector<1x8x128xf32>
    %26 = vector.shape_cast %25 : vector<1x8x128xf32> to vector<8x128xf32>
    %27 = arith.mulf %4, %24 : vector<8x128xf32>
    %28 = arith.addf %27, %20 : vector<8x128xf32>
    %29 = arith.mulf %6, %26 : vector<8x128xf32>
    %30 = arith.addf %29, %22 : vector<8x128xf32>
    %31 = math.exp %8 : vector<8x128xf32>
    %32 = arith.mulf %24, %31 : vector<8x128xf32>
    %33 = math.exp %10 : vector<8x128xf32>
    %34 = arith.mulf %26, %33 : vector<8x128xf32>
    %35 = arith.mulf %12, %24 : vector<8x128xf32>
    %36 = arith.addf %35, %20 : vector<8x128xf32>
    %37 = arith.mulf %14, %26 : vector<8x128xf32>
    %38 = arith.addf %37, %22 : vector<8x128xf32>
    %39 = math.exp %16 : vector<8x128xf32>
    %40 = arith.mulf %24, %39 : vector<8x128xf32>
    %41 = math.exp %18 : vector<8x128xf32>
    %42 = arith.mulf %26, %41 : vector<8x128xf32>
    %cst = arith.constant 5.000000e-01 : f32
    %43 = vector.broadcast %cst : f32 to vector<8x128xf32>
    %44 = arith.mulf %43, %32 : vector<8x128xf32>
    %45 = arith.subf %28, %44 : vector<8x128xf32>
    %cst_25 = arith.constant 5.000000e-01 : f32
    %46 = vector.broadcast %cst_25 : f32 to vector<8x128xf32>
    %47 = arith.mulf %46, %34 : vector<8x128xf32>
    %48 = arith.subf %30, %47 : vector<8x128xf32>
    %cst_26 = arith.constant 5.000000e-01 : f32
    %49 = vector.broadcast %cst_26 : f32 to vector<8x128xf32>
    %50 = arith.mulf %49, %32 : vector<8x128xf32>
    %51 = arith.addf %28, %50 : vector<8x128xf32>
    %cst_27 = arith.constant 5.000000e-01 : f32
    %52 = vector.broadcast %cst_27 : f32 to vector<8x128xf32>
    %53 = arith.mulf %52, %34 : vector<8x128xf32>
    %54 = arith.addf %30, %53 : vector<8x128xf32>
    %cst_28 = arith.constant 5.000000e-01 : f32
    %55 = vector.broadcast %cst_28 : f32 to vector<8x128xf32>
    %56 = arith.mulf %55, %40 : vector<8x128xf32>
    %57 = arith.subf %36, %56 : vector<8x128xf32>
    %cst_29 = arith.constant 5.000000e-01 : f32
    %58 = vector.broadcast %cst_29 : f32 to vector<8x128xf32>
    %59 = arith.mulf %58, %42 : vector<8x128xf32>
    %60 = arith.subf %38, %59 : vector<8x128xf32>
    %cst_30 = arith.constant 5.000000e-01 : f32
    %61 = vector.broadcast %cst_30 : f32 to vector<8x128xf32>
    %62 = arith.mulf %61, %40 : vector<8x128xf32>
    %63 = arith.addf %36, %62 : vector<8x128xf32>
    %cst_31 = arith.constant 5.000000e-01 : f32
    %64 = vector.broadcast %cst_31 : f32 to vector<8x128xf32>
    %65 = arith.mulf %64, %42 : vector<8x128xf32>
    %66 = arith.addf %38, %65 : vector<8x128xf32>
    %67 = arith.mulf %32, %34 : vector<8x128xf32>
    %68 = arith.mulf %40, %42 : vector<8x128xf32>
    %69 = arith.maximumf %45, %57 : vector<8x128xf32>
    %70 = arith.maximumf %48, %60 : vector<8x128xf32>
    %71 = arith.minimumf %51, %63 : vector<8x128xf32>
    %72 = arith.minimumf %54, %66 : vector<8x128xf32>
    %73 = arith.cmpf ogt, %72, %70 : vector<8x128xf32>
    %74 = arith.cmpf ogt, %71, %69 : vector<8x128xf32>
    %75 = arith.andi %73, %74 : vector<8x128xi1>
    %76 = arith.subf %71, %69 : vector<8x128xf32>
    %77 = arith.subf %72, %70 : vector<8x128xf32>
    %78 = arith.mulf %76, %77 : vector<8x128xf32>
    %cst_32 = arith.constant 0.000000e+00 : f32
    %79 = vector.broadcast %cst_32 : f32 to vector<8x128xf32>
    %80 = arith.select %75, %78, %79 : vector<8x128xi1>, vector<8x128xf32>
    %81 = arith.minimumf %45, %57 : vector<8x128xf32>
    %82 = arith.minimumf %48, %60 : vector<8x128xf32>
    %83 = arith.maximumf %51, %63 : vector<8x128xf32>
    %84 = arith.maximumf %54, %66 : vector<8x128xf32>
    %85 = arith.subf %83, %81 : vector<8x128xf32>
    %86 = arith.subf %84, %82 : vector<8x128xf32>
    %87 = arith.mulf %85, %86 : vector<8x128xf32>
    %cst_33 = arith.constant 1.000000e-07 : f32
    %88 = vector.broadcast %cst_33 : f32 to vector<8x128xf32>
    %89 = arith.addf %87, %88 : vector<8x128xf32>
    %90 = arith.addf %67, %68 : vector<8x128xf32>
    %91 = arith.subf %90, %80 : vector<8x128xf32>
    %cst_34 = arith.constant 1.000000e-07 : f32
    %92 = vector.broadcast %cst_34 : f32 to vector<8x128xf32>
    %93 = arith.addf %91, %92 : vector<8x128xf32>
    %94 = arith.divf %80, %93 : vector<8x128xf32>
    %95 = arith.subf %89, %93 : vector<8x128xf32>
    %96 = arith.divf %95, %89 : vector<8x128xf32>
    %97 = arith.subf %94, %96 : vector<8x128xf32>
    %cst_35 = arith.constant 1.000000e+00 : f32
    %98 = vector.broadcast %cst_35 : f32 to vector<8x128xf32>
    %99 = arith.subf %98, %97 : vector<8x128xf32>
    %100 = tpu.iota {dimensions = array<i32: 0>} : vector<8x128xi32>
    %101 = tpu.iota {dimensions = array<i32: 1>} : vector<8x128xi32>
    %c1_i32 = arith.constant 1 : i32
    %102 = arith.muli %arg0, %c1_i32 : i32
    %103 = arith.addi %102, %arg1 : i32
    %c8_i32 = arith.constant 8 : i32
    %104 = arith.muli %103, %c8_i32 : i32
    %105 = vector.broadcast %104 : i32 to vector<8x128xi32>
    %106 = arith.addi %105, %100 : vector<8x128xi32>
    %c128_i32 = arith.constant 128 : i32
    %107 = vector.broadcast %c128_i32 : i32 to vector<8x128xi32>
    %108 = arith.muli %106, %107 : vector<8x128xi32>
    %109 = arith.addi %108, %101 : vector<8x128xi32>
    %c0_36 = arith.constant 0 : index
    %110 = memref.load %arg2[%c0_36] : memref<2xi32, #tpu.memory_space<smem>>
    %111 = vector.broadcast %110 : i32 to vector<8x128xi32>
    %112 = arith.cmpi slt, %109, %111 : vector<8x128xi32>
    %c1_37 = arith.constant 1 : index
    %113 = memref.load %arg2[%c1_37] : memref<2xi32, #tpu.memory_space<smem>>
    %c0_i32_38 = arith.constant 0 : i32
    %114 = arith.cmpi sgt, %113, %c0_i32_38 : i32
    %c12 = arith.constant 12 : index
    %c0_39 = arith.constant 0 : index
    %c0_40 = arith.constant 0 : index
    %115 = vector.load %arg3[%c12, %c0_39, %c0_40] : memref<13x8x128xf32, #tpu.memory_space<vmem>>, vector<1x8x128xf32>
    %116 = vector.shape_cast %115 : vector<1x8x128xf32> to vector<8x128xf32>
    %cst_41 = arith.constant 1.000000e+00 : f32
    %117 = vector.broadcast %cst_41 : f32 to vector<8x128xf32>
    %118 = arith.select %114, %116, %117 : vector<8x128xf32>
    %119 = arith.mulf %99, %118 : vector<8x128xf32>
    %c0_42 = arith.constant 0 : index
    %c0_43 = arith.constant 0 : index
    %c0_44 = arith.constant 0 : index
    %120 = vector.load %arg4[%c0_42, %c0_43, %c0_44] : memref<1x8x128xf32, #tpu.memory_space<vmem>>, vector<1x8x128xf32>
    %cst_45 = arith.constant 0.000000e+00 : f32
    %121 = vector.broadcast %cst_45 : f32 to vector<8x128xf32>
    %122 = arith.select %112, %119, %121 : vector<8x128xi1>, vector<8x128xf32>
    %123 = vector.shape_cast %122 : vector<8x128xf32> to vector<1x8x128xf32>
    %124 = arith.addf %120, %123 : vector<1x8x128xf32>
    %c0_46 = arith.constant 0 : index
    %c0_47 = arith.constant 0 : index
    %c0_48 = arith.constant 0 : index
    %125 = vector.load %arg4[%c0_46, %c0_47, %c0_48] : memref<1x8x128xf32, #tpu.memory_space<vmem>>, vector<1x8x128xf32>
    tpu.vector_store %arg4[%c0_46, %c0_47, %c0_48], %124 {strides = array<i32>} : memref<1x8x128xf32, #tpu.memory_space<vmem>>, vector<1x8x128xf32>,
    return
  }
  func.func @transform_0(%arg0: i32, %arg1: i32, %arg2: memref<2xi32, #tpu.memory_space<smem>>) -> (i32, i32, i32) {
    %c1_i32 = arith.constant 1 : i32
    %0 = arith.muli %arg0, %c1_i32 : i32
    %1 = arith.addi %0, %arg1 : i32
    %c0_i32 = arith.constant 0 : i32
    %c0_i32_0 = arith.constant 0 : i32
    %c0_i32_1 = arith.constant 0 : i32
    return %c0_i32, %1, %c0_i32_0 : i32, i32, i32
  }
  func.func @transform_1(%arg0: i32, %arg1: i32, %arg2: memref<2xi32, #tpu.memory_space<smem>>) -> (i32, i32, i32) {
    %c0_i32 = arith.constant 0 : i32
    %c0_i32_0 = arith.constant 0 : i32
    %c0_i32_1 = arith.constant 0 : i32
    return %arg0, %c0_i32, %c0_i32_0 : i32, i32, i32
  }
}

</mosaic_0001>

<llo_original>
// kernel: _giou_impl.1
$region0: #{_giou_impl.1}
  #allocation0 [shape = 'u32[]', space=smem, size = 0x4, offset = 0x4, fixed_abs, tag = 'smem constant byte address 0x4 - core index']
  #allocation1 [shape = 'u32[72,128]{1,0:T(1,128)}', space=vmem, size = 0x9000, scoped, tag = 'internal scratch']
  #allocation2 [shape = 's32[1]{0}', space=sflag, size = 0x4, scoped, tag = 'scoped memory for _giou_impl.1']
  #allocation3 [shape = 'u8[512]{0}', space=smem, size = 0x200, scoped, tag = 'prefetched SMEM operand 0']
  %s0 = inlined_call_operand.vmem [shape: s32[2], index: 0, kind: input, shape index: {}]
  %s1 = inlined_call_operand.vmem [shape: f32[13,8,128], index: 1, kind: input, shape index: {}]
  %s2 = inlined_call_operand.vmem [shape: f32[1,8,128], index: 2, kind: output, shape index: {}]
  %s3 = sld [smem:[#allocation0]]
  $region18: #{_giou_impl.1} parent=0
    _
  %s5 = ssub.s32 1, %s3
  %s6 = scalar_select 0, %s5, %s3
  %s8 = sshll.u32 %s0, 4
  %s9 = int_to_ptr.vmem [resolvable:$true] %s8
  %11 = dma.vmem_to_smem %s9, 16, [#allocation3], [#allocation2]
  %13 = dma.done [#allocation2], 16
  %14 = sfence
  // Predicated region
  $region2: #{_giou_impl.1} parent=0 // pred_check
    _
  $region3: #{_giou_impl.1} parent=0 // pred_check_branch
    %16 = sbr.rel (0) target = $region5
  $region4: #{_giou_impl.1} parent=0 // pred_region
    %s17 = sadd.s32 0, 0
    %p18 = scmp.lt.s32.totalorder %s17, 0
    %s19 = scalar_select %p18, %s17, 0
    %s20 = smul.addr %s19, 8
    %s21 = scalar_lea.vmem %s1, %s20
    %s22 = sadd.s32 0, 0
  $region5: #{_giou_impl.1} parent=0 // pred_fallthru
    _
  %s23 = sadd.s32 0, 0
  %p24 = scmp.lt.s32.totalorder %s23, 0
  %s25 = scalar_select %p24, %s23, 0
  %s26 = smul.addr %s25, 8
  %s27 = scalar_lea.vmem %s1, %s26
  %s28 = sadd.s32 0, 0
  %p29 = scmp.lt.s32.totalorder %s28, 0
  %s30 = scalar_select %p29, %s28, 0
  %s31 = smul.addr %s30, 8
  %s32 = scalar_lea.vmem %s1, %s31
  %s33 = sadd.s32 0, 0
  %p34 = scmp.eq.s32.totalorder 0, 0
  // Predicated region
  $region6: #{_giou_impl.1} parent=0 // pred_check
    %p35 = pneg %p34
  $region7: #{_giou_impl.1} parent=0 // pred_check_branch
    %37 = sbr.rel (%p35) target = $region9
  $region8: #{_giou_impl.1} parent=0 // pred_region
    %38 = vst [vmem:[%s2] sm:$0xff] 0.0
  $region9: #{_giou_impl.1} parent=0 // pred_fallthru
    _
  %v39 = vld [vmem:[%s32] sm:$0xff]
  %s40 = scalar_lea.vmem %s32, 8
  %v41 = vld [vmem:[%s40] sm:$0xff]
  %s42 = scalar_lea.vmem %s32, 16
  %v43 = vld [vmem:[%s42] sm:$0xff]
  %s44 = scalar_lea.vmem %s32, 24
  %v45 = vld [vmem:[%s44] sm:$0xff]
  %s46 = scalar_lea.vmem %s32, 32
  %v47 = vld [vmem:[%s46] sm:$0xff]
  %s48 = scalar_lea.vmem %s32, 40
  %v49 = vld [vmem:[%s48] sm:$0xff]
  %s50 = scalar_lea.vmem %s32, 48
  %v51 = vld [vmem:[%s50] sm:$0xff]
  %s52 = scalar_lea.vmem %s32, 56
  %v53 = vld [vmem:[%s52] sm:$0xff]
  %s54 = scalar_lea.vmem %s32, 64
  %v55 = vld [vmem:[%s54] sm:$0xff]
  %s56 = scalar_lea.vmem %s32, 72
  %v57 = vld [vmem:[%s56] sm:$0xff]
  %s58 = scalar_lea.vmem %s32, 80
  %v59 = vld [vmem:[%s58] sm:$0xff]
  %s60 = scalar_lea.vmem %s32, 88
  %v61 = vld [vmem:[%s60] sm:$0xff]
  %v62 = vmul.f32 %v39, %v59
  %v63 = vadd.f32 %v62, %v55
  %v64 = vmul.f32 %v41, %v61
  %v65 = vadd.f32 %v64, %v57
  %v66 = vmul.f32 %v43, 1.442695
  %v67 = vpow.pop %v66
  %v68 = vmul.f32 %v59, %v67
  %v69 = vmul.f32 %v45, 1.442695
  %v70 = vpow.pop %v69
  %v71 = vmul.f32 %v61, %v70
  %v72 = vmul.f32 %v47, %v59
  %v73 = vadd.f32 %v72, %v55
  %v74 = vmul.f32 %v49, %v61
  %v75 = vadd.f32 %v74, %v57
  %v76 = vmul.f32 %v51, 1.442695
  %v77 = vpow.pop %v76
  %v78 = vmul.f32 %v59, %v77
  %v79 = vmul.f32 %v53, 1.442695
  %v80 = vpow.pop %v79
  %v81 = vmul.f32 %v61, %v80
  %v82 = vmul.f32 %v68, 0.5
  %v83 = vsub.f32 %v63, %v82
  %v84 = vmul.f32 %v71, 0.5
  %v85 = vsub.f32 %v65, %v84
  %v86 = vadd.f32 %v63, %v82
  %v87 = vadd.f32 %v65, %v84
  %v88 = vmul.f32 %v78, 0.5
  %v89 = vsub.f32 %v73, %v88
  %v90 = vmul.f32 %v81, 0.5
  %v91 = vsub.f32 %v75, %v90
  %v92 = vadd.f32 %v73, %v88
  %v93 = vadd.f32 %v75, %v90
  %v94 = vmul.f32 %v68, %v71
  %v95 = vmul.f32 %v78, %v81
  %v96 = vmax.f32 %v83, %v89
  %v97 = vmax.f32 %v85, %v91
  %v98 = vmin.f32 %v86, %v92
  %v99 = vmin.f32 %v87, %v93
  %vm100 = vcmp.gt.f32.partialorder %v99, %v97
  %vm101 = vcmp.gt.f32.partialorder %v98, %v96
  %vm102 = vmand %vm100, %vm101
  %v103 = vsub.f32 %v98, %v96
  %v104 = vsub.f32 %v99, %v97
  %v105 = vmul.f32 %v103, %v104
  %v106 = vsel %vm102, %v105, 0.0
  %v107 = vmin.f32 %v83, %v89
  %v108 = vmin.f32 %v85, %v91
  %v109 = vmax.f32 %v86, %v92
  %v110 = vmax.f32 %v87, %v93
  %v111 = vsub.f32 %v109, %v107
  %v112 = vsub.f32 %v110, %v108
  %v113 = vmul.f32 %v111, %v112
  %v114 = vadd.f32 %v113, 1e-07
  %v115 = vadd.f32 %v94, %v95
  %v116 = vsub.f32 %v115, %v106
  %v117 = vadd.f32 %v116, 1e-07
  %v118 = vrcp.pop %v117
  %v119 = vmul.f32 %v117, %v118
  %v120 = vsub.f32 1.0, %v119
  %v121 = vmul.f32 %v118, %v120
  %v122 = vadd.f32 %v118, %v121
  %vm123 = vweird.f32 %v117
  %vm124 = vweird.f32 %v118
  %vm125 = vmor %vm123, %vm124
  %v126 = vsel %vm125, %v118, %v122
  %v127 = vand.u32 2147483647, %v117
  %vm128 = vcmp.eq.f32.partialorder %v127, 8.507059e+37
  %v129 = vand.u32 %v117, 2147483648
  %v130 = vor.u32 1.1754944e-38, %v129
  %v131 = vsel %vm128, %v130, %v126
  %v132 = vmul.f32 %v106, %v131
  %v133 = vsub.f32 %v114, %v117
  %v134 = vrcp.pop %v114
  %v135 = vmul.f32 %v114, %v134
  %v136 = vsub.f32 1.0, %v135
  %v137 = vmul.f32 %v134, %v136
  %v138 = vadd.f32 %v134, %v137
  %vm139 = vweird.f32 %v114
  %vm140 = vweird.f32 %v134
  %vm141 = vmor %vm139, %vm140
  %v142 = vsel %vm141, %v134, %v138
  %v143 = vand.u32 2147483647, %v114
  %vm144 = vcmp.eq.f32.partialorder %v143, 8.507059e+37
  %v145 = vand.u32 %v114, 2147483648
  %v146 = vor.u32 1.1754944e-38, %v145
  %v147 = vsel %vm144, %v146, %v142
  %v148 = vmul.f32 %v133, %v147
  %v149 = vsub.f32 %v132, %v148
  %v150 = vsub.f32 1.0, %v149
  %v151 = vlaneseq
  %v152 = vshrl.u32 %v151, 7
  %v153 = vlaneseq
  %v154 = vand.u32 %v153, 127
  %s155 = sadd.s32 0, 0
  %s156 = smul.u32 %s155, 8
  %v157 = vstv %s156
  %v158 = vadd.s32 %v157, %v152
  %v159 = vmul.u32 %v158, 128
  %v160 = vadd.s32 %v159, %v154
  %s161 = sld [smem:[#allocation3]]
  %v162 = vstv %s161
  %vm163 = vcmp.lt.s32.totalorder %v160, %v162
  %s164 = sld [smem:[#allocation3 + $0x1]]
  %p165 = scmp.gt.s32.totalorder %s164, 0
  %s166 = scalar_lea.vmem %s32, 96
  %v167 = vld [vmem:[%s166] sm:$0xff]
  %s168 = scalar_select %p165, 1, 0
  %v169 = vstv %s168
  %vm170 = vcmp.eq.s32.totalorder %v169, 1
  %v171 = vsel %vm170, %v167, 1.0
  %v172 = vmul.f32 %v150, %v171
  %v173 = vld [vmem:[%s2] sm:$0xff]
  %v174 = vsel %vm163, %v172, 0.0
  %v175 = vadd.f32 %v173, %v174
  %176 = vst [vmem:[%s2] sm:$0xff] %v175
  // Predicated region
  $region10: #{_giou_impl.1} parent=0 // pred_check
    _
  $region11: #{_giou_impl.1} parent=0 // pred_check_branch
    %178 = sbr.rel (0) target = $region13
  $region12: #{_giou_impl.1} parent=0 // pred_region
    _
  $region13: #{_giou_impl.1} parent=0 // pred_fallthru
    _
  // Predicated region
  $region14: #{_giou_impl.1} parent=0 // pred_check
    _
  $region15: #{_giou_impl.1} parent=0 // pred_check_branch
    %180 = sbr.rel (0) target = $region17
  $region16: #{_giou_impl.1} parent=0 // pred_region
    _
  $region17: #{_giou_impl.1} parent=0 // pred_fallthru
    _

</llo_original>
